<compile_context>
chip_gen: v5e
topology: v5e:2x2
jax: 0.10.0
libtpu: 0.0.40
codegen_flags: <defaults>
</compile_context>

<pallas_src>
import functools

import jax
import jax.numpy as jnp
from jax.experimental import pallas as pl
from jax.experimental.pallas import tpu as pltpu

IN_FEATURES = 2
HIDDEN = 16
SPLIT_TENSOR_NODES = 32  # stand-in for args.split_tensor_nodes

_LANE = 128
_VMEM_BUDGET_BYTES = 30 * 1024 * 1024   # target usage when picking the tile
_VMEM_LIMIT_BYTES = 48 * 1024 * 1024    # scoped limit (<= 48 MiB: safe on v7x too)


def _round_up(x, m):
    return (x + m - 1) // m * m


def _cdiv(a, b):
    return -(-a // b)


def _mlp_kernel(x_ref, w1_ref, b1_ref, w2_ref, b2_ref, o_ref):
    # x_ref:  [bt, IN]    w1_ref: [IN, H]    b1_ref: [1, H]
    # w2_ref: [H, N]      b2_ref: [1, N]     o_ref:  [bt, N]
    x = x_ref[...].astype(jnp.float32)
    w1 = w1_ref[...].astype(jnp.float32)
    b1 = b1_ref[...].astype(jnp.float32)

    # linear1: K == IN_FEATURES == 2 -> two broadcast FMAs on the VPU.
    # (MXU/VPU have enormous slack here; the kernel is HBM-bound.)
    f_in = x.shape[1]
    h = x[:, 0:1] * w1[0:1, :]
    for k in range(1, f_in):
        h = h + x[:, k:k + 1] * w1[k:k + 1, :]
    h = jnp.maximum(h + b1, 0.0)                                  # ReLU 1, [bt, H]

    # linear2: [bt, H] @ [H, N] on the MXU, f32 accumulation.
    w2 = w2_ref[...].astype(jnp.float32)
    b2 = b2_ref[...].astype(jnp.float32)
    o = jnp.dot(h, w2, preferred_element_type=jnp.float32) + b2
    o_ref[...] = jnp.maximum(o, 0.0).astype(o_ref.dtype)          # ReLU 2


def _pick_batch_tile(B, x_itemsize, out_itemsize, requested):
    """Lane-aligned batch tile, VMEM-bounded, >= 4 grid steps when possible."""
    if B <= _LANE:
        return B  # single exact block (block dim == full array dim is legal)
    # Per-row VMEM estimate: double-buffered x / out blocks (last dim padded to
    # 128 lanes) plus two f32 temporaries (hidden activations + pre-cast output).
    per_row = 2 * _LANE * x_itemsize + 2 * _LANE * out_itemsize + 2 * _LANE * 4
    vmem_cap = max(_LANE, (_VMEM_BUDGET_BYTES // per_row) // _LANE * _LANE)
    bt = min(_round_up(requested, _LANE), vmem_cap)
    # Never let the block exceed the array along the batch axis.
    bt = max(_LANE, min(bt, (B // _LANE) * _LANE))
    # Aim for >= 4 steps (>= 2 per TensorCore on v7x) so DMA/compute pipeline.
    if _cdiv(B, bt) < 4:
        bt = min(bt, max(_LANE, _round_up(_cdiv(B, 4), _LANE)))
    return bt


@functools.partial(jax.jit, static_argnames=("batch_tile", "out_dtype"))
def client_network_forward(x, w1, b1, w2, b2, *, batch_tile=8192, out_dtype=None):
    """Fused ClientNetwork forward: relu(relu(x @ w1 + b1) @ w2 + b2).

    x: [B, 2]; w1: [2, H]; b1: (H,) or (1, H); w2: [H, N]; b2: (N,) or (1, N).
    Returns [B, N] in `out_dtype` (default x.dtype).  Pass bf16 x / out_dtype
    when the consumer tolerates it -- the output stream dominates HBM traffic.
    """
    B, f_in = x.shape
    assert f_in == IN_FEATURES
    H = w1.shape[1]
    N = w2.shape[1]
    out_dtype = jnp.dtype(out_dtype) if out_dtype is not None else x.dtype

    bt = _pick_batch_tile(B, x.dtype.itemsize, out_dtype.itemsize, batch_tile)
    grid = (_cdiv(B, bt),)

    b1c = jnp.reshape(b1, (1, H))
    b2c = jnp.reshape(b2, (1, N))

    cost = pl.CostEstimate(
        flops=B * (2 * f_in * H + 2 * H * N),
        transcendentals=0,
        bytes_accessed=(B * f_in * x.dtype.itemsize
                        + B * N * out_dtype.itemsize
                        + (f_in * H + H + H * N + N) * w1.dtype.itemsize),
    )

    out = pl.pallas_call(
        _mlp_kernel,
        out_shape=jax.ShapeDtypeStruct((B, N), out_dtype),
        grid_spec=pltpu.PrefetchScalarGridSpec(
            num_scalar_prefetch=0,
            grid=grid,
            in_specs=[
                pl.BlockSpec((bt, f_in), lambda i: (i, 0)),   # x, native layout
                pl.BlockSpec((f_in, H), lambda i: (0, 0)),    # w1 (tiny, resident)
                pl.BlockSpec((1, H), lambda i: (0, 0)),       # b1
                pl.BlockSpec((H, N), lambda i: (0, 0)),       # w2
                pl.BlockSpec((1, N), lambda i: (0, 0)),       # b2
            ],
            out_specs=pl.BlockSpec((bt, N), lambda i: (i, 0)),  # native [B, N] out
        ),
        compiler_params=pltpu.CompilerParams(
            dimension_semantics=("parallel",),   # batch steps shard across TCs
            vmem_limit_bytes=_VMEM_LIMIT_BYTES,
        ),
        cost_estimate=cost,
    )(x, w1, b1c, w2, b2c)
    return out


def _init_linear_params(key, fan_in, fan_out):
    """Mimics torch.nn.Linear default init (U[-1/sqrt(fan_in), 1/sqrt(fan_in)]).

    Weight stored as [fan_in, fan_out] (transposed vs torch) so math is x @ W + b.
    """
    kw, kb = jax.random.split(key)
    bound = 1.0 / jnp.sqrt(jnp.float32(fan_in))
    w = jax.random.uniform(kw, (fan_in, fan_out), jnp.float32, -bound, bound)
    b = jax.random.uniform(kb, (1, fan_out), jnp.float32, -bound, bound)
    return w, b


def _reference_forward(x, w1, b1, w2, b2):
    h = jnp.maximum(x @ w1 + jnp.reshape(b1, (1, -1)), 0.0)
    return jnp.maximum(h @ w2 + jnp.reshape(b2, (1, -1)), 0.0)


if __name__ == "__main__":
    key = jax.random.PRNGKey(0)
    kx, k1, k2, kx2 = jax.random.split(key, 4)

    w1, b1 = _init_linear_params(k1, IN_FEATURES, HIDDEN)
    w2, b2 = _init_linear_params(k2, HIDDEN, SPLIT_TENSOR_NODES)

    # --- small f32 check (batch=8, single exact block), tight tolerance ------
    batch = 8
    x = jax.random.normal(kx, (batch, IN_FEATURES), jnp.float32)
    out = jax.block_until_ready(client_network_forward(x, w1, b1, w2, b2))
    ref = _reference_forward(x, w1, b1, w2, b2)
    assert out.shape == (batch, SPLIT_TENSOR_NODES)
    assert jnp.allclose(out, ref, atol=1e-5, rtol=1e-5), "f32 mismatch vs reference"

    # --- larger batch with bf16 I/O: exercises the multi-step grid, the
    #     ragged last block, and the half-bandwidth output path ---------------
    batch2 = 1000
    x2 = jax.random.normal(kx2, (batch2, IN_FEATURES), jnp.float32).astype(jnp.bfloat16)
    out2 = jax.block_until_ready(
        client_network_forward(x2, w1, b1, w2, b2, out_dtype=jnp.bfloat16)
    )
    ref2 = _reference_forward(x2.astype(jnp.float32), w1, b1, w2, b2)
    assert out2.shape == (batch2, SPLIT_TENSOR_NODES)
    assert out2.dtype == jnp.bfloat16
    assert jnp.allclose(out2.astype(jnp.float32), ref2, atol=2e-2, rtol=2e-2), \
        "bf16 mismatch vs reference"

    print("KERNEL_OK")
</pallas_src>

<mosaic_0001>
module attributes {stable_mosaic.version = 11 : i64} {
  func.func @_mlp_kernel(%arg0: i32, %arg1: memref<8x2xf32, #tpu.memory_space<vmem>>, %arg2: memref<2x16xf32, #tpu.memory_space<vmem>>, %arg3: memref<1x16xf32, #tpu.memory_space<vmem>>, %arg4: memref<16x32xf32, #tpu.memory_space<vmem>>, %arg5: memref<1x32xf32, #tpu.memory_space<vmem>>, %arg6: memref<8x32xf32, #tpu.memory_space<vmem>>) attributes {dimension_semantics = [#tpu.dimension_semantics<parallel>], iteration_bounds = array<i64: 1>, scalar_prefetch = 0 : i64, scratch_operands = 0 : i64, tpu.core_type = #tpu.core_type<tc>, window_params = [{transform_indices = @transform_0, window_bounds = array<i64: 8, 2>}, {pipeline_mode = #tpu.pipeline_mode<synchronous>, transform_indices = @transform_1, window_bounds = array<i64: 2, 16>}, {pipeline_mode = #tpu.pipeline_mode<synchronous>, transform_indices = @transform_2, window_bounds = array<i64: 1, 16>}, {pipeline_mode = #tpu.pipeline_mode<synchronous>, transform_indices = @transform_3, window_bounds = array<i64: 16, 32>}, {pipeline_mode = #tpu.pipeline_mode<synchronous>, transform_indices = @transform_4, window_bounds = array<i64: 1, 32>}, {transform_indices = @transform_5, window_bounds = array<i64: 8, 32>}]} {
    %c0 = arith.constant 0 : index
    %c0_0 = arith.constant 0 : index
    %0 = vector.load %arg1[%c0, %c0_0] : memref<8x2xf32, #tpu.memory_space<vmem>>, vector<8x2xf32>
    %c0_1 = arith.constant 0 : index
    %c0_2 = arith.constant 0 : index
    %1 = vector.load %arg2[%c0_1, %c0_2] : memref<2x16xf32, #tpu.memory_space<vmem>>, vector<2x16xf32>
    %c0_3 = arith.constant 0 : index
    %c0_4 = arith.constant 0 : index
    %2 = vector.load %arg3[%c0_3, %c0_4] : memref<1x16xf32, #tpu.memory_space<vmem>>, vector<1x16xf32>
    %3 = vector.extract_strided_slice %0 {offsets = [0, 0], sizes = [8, 1], strides = [1, 1]} : vector<8x2xf32> to vector<8x1xf32>
    %4 = vector.extract_strided_slice %1 {offsets = [0, 0], sizes = [1, 16], strides = [1, 1]} : vector<2x16xf32> to vector<1x16xf32>
    %5 = vector.broadcast %3 : vector<8x1xf32> to vector<8x16xf32>
    %6 = vector.broadcast %4 : vector<1x16xf32> to vector<8x16xf32>
    %7 = arith.mulf %5, %6 : vector<8x16xf32>
    %8 = vector.extract_strided_slice %0 {offsets = [0, 1], sizes = [8, 1], strides = [1, 1]} : vector<8x2xf32> to vector<8x1xf32>
    %9 = vector.extract_strided_slice %1 {offsets = [1, 0], sizes = [1, 16], strides = [1, 1]} : vector<2x16xf32> to vector<1x16xf32>
    %10 = vector.broadcast %8 : vector<8x1xf32> to vector<8x16xf32>
    %11 = vector.broadcast %9 : vector<1x16xf32> to vector<8x16xf32>
    %12 = arith.mulf %10, %11 : vector<8x16xf32>
    %13 = arith.addf %7, %12 : vector<8x16xf32>
    %14 = vector.broadcast %2 : vector<1x16xf32> to vector<8x16xf32>
    %15 = arith.addf %13, %14 : vector<8x16xf32>
    %cst = arith.constant 0.000000e+00 : f32
    %16 = vector.broadcast %cst : f32 to vector<8x16xf32>
    %17 = arith.maximumf %15, %16 : vector<8x16xf32>
    %c0_5 = arith.constant 0 : index
    %c0_6 = arith.constant 0 : index
    %18 = vector.load %arg4[%c0_5, %c0_6] : memref<16x32xf32, #tpu.memory_space<vmem>>, vector<16x32xf32>
    %c0_7 = arith.constant 0 : index
    %c0_8 = arith.constant 0 : index
    %19 = vector.load %arg5[%c0_7, %c0_8] : memref<1x32xf32, #tpu.memory_space<vmem>>, vector<1x32xf32>
    %cst_9 = arith.constant dense<0.000000e+00> : vector<8x32xf32>
    %20 = tpu.matmul %17, %18, %cst_9 {dimension_numbers = #tpu.dot_dimension_numbers<[1], [0], [0], [1], [0, 0, 1, 1], [], []>} : vector<8x16xf32>, vector<16x32xf32>, vector<8x32xf32> -> vector<8x32xf32>
    %21 = vector.broadcast %19 : vector<1x32xf32> to vector<8x32xf32>
    %22 = arith.addf %20, %21 : vector<8x32xf32>
    %cst_10 = arith.constant 0.000000e+00 : f32
    %23 = vector.broadcast %cst_10 : f32 to vector<8x32xf32>
    %24 = arith.maximumf %22, %23 : vector<8x32xf32>
    %c0_11 = arith.constant 0 : index
    %c0_12 = arith.constant 0 : index
    %25 = vector.load %arg6[%c0_11, %c0_12] : memref<8x32xf32, #tpu.memory_space<vmem>>, vector<8x32xf32>
    tpu.vector_store %arg6[%c0_11, %c0_12], %24 {strides = array<i32>} : memref<8x32xf32, #tpu.memory_space<vmem>>, vector<8x32xf32>,
    return
  }
  func.func @transform_0(%arg0: i32) -> (i32, i32) {
    %c0_i32 = arith.constant 0 : i32
    %c0_i32_0 = arith.constant 0 : i32
    return %arg0, %c0_i32 : i32, i32
  }
  func.func @transform_1(%arg0: i32) -> (i32, i32) {
    %c0_i32 = arith.constant 0 : i32
    %c0_i32_0 = arith.constant 0 : i32
    %c0_i32_1 = arith.constant 0 : i32
    return %c0_i32, %c0_i32_0 : i32, i32
  }
  func.func @transform_2(%arg0: i32) -> (i32, i32) {
    %c0_i32 = arith.constant 0 : i32
    %c0_i32_0 = arith.constant 0 : i32
    %c0_i32_1 = arith.constant 0 : i32
    return %c0_i32, %c0_i32_0 : i32, i32
  }
  func.func @transform_3(%arg0: i32) -> (i32, i32) {
    %c0_i32 = arith.constant 0 : i32
    %c0_i32_0 = arith.constant 0 : i32
    %c0_i32_1 = arith.constant 0 : i32
    return %c0_i32, %c0_i32_0 : i32, i32
  }
  func.func @transform_4(%arg0: i32) -> (i32, i32) {
    %c0_i32 = arith.constant 0 : i32
    %c0_i32_0 = arith.constant 0 : i32
    %c0_i32_1 = arith.constant 0 : i32
    return %c0_i32, %c0_i32_0 : i32, i32
  }
  func.func @transform_5(%arg0: i32) -> (i32, i32) {
    %c0_i32 = arith.constant 0 : i32
    %c0_i32_0 = arith.constant 0 : i32
    return %arg0, %c0_i32 : i32, i32
  }
}

</mosaic_0001>

<llo_original>
// kernel: client_network_forward.1
$region0: #{client_network_forward.1}
  #allocation0 [shape = 'u32[]', space=smem, size = 0x4, offset = 0x4, fixed_abs, tag = 'smem constant byte address 0x4 - core index']
  #allocation1 [shape = 'u32[72,128]{1,0:T(1,128)}', space=vmem, size = 0x9000, scoped, tag = 'internal scratch']
  %s0 = inlined_call_operand.vmem [shape: f32[8,2], index: 0, kind: input, shape index: {}]
  %s1 = inlined_call_operand.vmem [shape: f32[2,16], index: 1, kind: input, shape index: {}]
  %s2 = inlined_call_operand.vmem [shape: f32[1,16], index: 2, kind: input, shape index: {}]
  %s3 = inlined_call_operand.hbm [shape: f32[16,32], index: 3, kind: input, shape index: {}]
  %s4 = inlined_call_operand.vmem [shape: f32[1,32], index: 4, kind: input, shape index: {}]
  %s5 = inlined_call_operand.hbm [shape: f32[8,32], index: 5, kind: output, shape index: {}]
  %s6 = sld [smem:[#allocation0]]
  $region34: #{client_network_forward.1} parent=0
    _
  %s8 = ssub.s32 1, %s6
  %s9 = scalar_select 0, %s8, %s6
  $region1: #{client_network_forward.1} parent=0
    #allocation2 [shape = 'u8[8192]{0}', space=vmem, size = 0x2000, scoped, tag = 'input window, operand 3, single buffered']
    #allocation3 [shape = 's32[1]{0}', space=sflag, size = 0x4, scoped, tag = 'scoped memory for client_network_forward.1']
    #allocation4 [shape = 's32[1]{0}', space=sflag, size = 0x4, scoped, tag = 'scoped memory for client_network_forward.1']
    #allocation5 [shape = 'u8[4096]{0}', space=vmem, size = 0x1000, scoped, tag = 'output window, operand 0, single buffered']
    %10 = vsyncpa [#allocation3], 0
    %11 = vsyncpa [#allocation4], 0
    // Predicated region
    $region2: #{client_network_forward.1} parent=1 // pred_check
      _
    $region3: #{client_network_forward.1} parent=1 // pred_check_branch
      %13 = sbr.rel (0) target = $region5
    $region4: #{client_network_forward.1} parent=1 // pred_region
      _
    $region5: #{client_network_forward.1} parent=1 // pred_fallthru
      _
    // Predicated region
    $region6: #{client_network_forward.1} parent=1 // pred_check
      _
    $region7: #{client_network_forward.1} parent=1 // pred_check_branch
      %15 = sbr.rel (0) target = $region9
    $region8: #{client_network_forward.1} parent=1 // pred_region
      _
    $region9: #{client_network_forward.1} parent=1 // pred_fallthru
      _
    // Predicated region
    $region10: #{client_network_forward.1} parent=1 // pred_check
      _
    $region11: #{client_network_forward.1} parent=1 // pred_check_branch
      %17 = sbr.rel (0) target = $region13
    $region12: #{client_network_forward.1} parent=1 // pred_region
      _
    $region13: #{client_network_forward.1} parent=1 // pred_fallthru
      _
    // Predicated region
    $region14: #{client_network_forward.1} parent=1 // pred_check
      _
    $region15: #{client_network_forward.1} parent=1 // pred_check_branch
      %19 = sbr.rel (0) target = $region17
    $region16: #{client_network_forward.1} parent=1 // pred_region
      %21 = vsyncadd [#allocation3], 0
      %s22 = sshll.u32 %s3, 4
      %s23 = int_to_ptr.hbm [resolvable:$true] %s22
      %s24 = sshll.u32 [#allocation2], 4
      %s25 = int_to_ptr.vmem [resolvable:$true] %s24
      %30 = dma.hbm_to_vmem [thread:$0]  %s23, 256, %s25, [#allocation3], 128, 128, 8
    $region17: #{client_network_forward.1} parent=1 // pred_fallthru
      _
    // Predicated region
    $region18: #{client_network_forward.1} parent=1 // pred_check
      _
    $region19: #{client_network_forward.1} parent=1 // pred_check_branch
      %32 = sbr.rel (0) target = $region21
    $region20: #{client_network_forward.1} parent=1 // pred_region
      _
    $region21: #{client_network_forward.1} parent=1 // pred_fallthru
      _
    // Predicated region
    $region22: #{client_network_forward.1} parent=1 // pred_check
      _
    $region23: #{client_network_forward.1} parent=1 // pred_check_branch
      %34 = sbr.rel (0) target = $region25
    $region24: #{client_network_forward.1} parent=1 // pred_region
      %36 = dma.done [#allocation3], 256
    $region25: #{client_network_forward.1} parent=1 // pred_fallthru
      _
    %v37 = vld [vmem:[%s0] sm:$0xff]
    %v38 = vld [vmem:[%s1] sm:$0x3]
    %v39 = vld [vmem:[%s2] sm:$0x1]
    %41 = vset.pattern.permute.xlu0 0
    %42 = vperm.xlu0 %41, %v37
    %v43 = vpop.permute.xlu0 %42
    %v45 = vperm.slane %v38, 0
    %v46 = vmul.f32 %v43, %v45
    %47 = vset.pattern.permute.xlu0 1
    %48 = vperm.xlu0 %47, %v37
    %v49 = vpop.permute.xlu0 %48
    %v51 = vperm.slane %v38, 1
    %v52 = vmul.f32 %v49, %v51
    %v53 = vadd.f32 %v46, %v52
    %v55 = vperm.slane %v39, 0
    %v57 = vadd.f32 %v53, %v55
    %v58 = vmax.f32 %v57, 0.0
    %v59 = vld [vmem:[#allocation2] sm:$0xff]
    %v60 = vld [vmem:[#allocation2 + $0x8] sm:$0xff]
    %v61 = vld [vmem:[%s4] sm:$0x1]
    %v63 = vperm.slane %v61, 0
    %vm65 = vcmask 130048
    %v67 = vsel %vm65, %v58, 0
    %69 = vmatpush.msra.mxu0 0.0
    %70 = vmatpush.msra.mxu0 0.0
    %71 = vmatpush.msra.mxu0 0.0
    %72 = vmatpush.msra.mxu0 0.0
    %73 = vmatpush.msra.mxu0 0.0
    %74 = vmatpush.msra.mxu0 0.0
    %75 = vmatpush.msra.mxu0 0.0
    %76 = vmatpush.msra.mxu0 0.0
    %77 = vmatpush.msra.mxu0 0.0
    %78 = vmatpush.msra.mxu0 0.0
    %79 = vmatpush.msra.mxu0 0.0
    %80 = vmatpush.msra.mxu0 0.0
    %81 = vmatpush.msra.mxu0 0.0
    %82 = vmatpush.msra.mxu0 0.0
    %83 = vmatpush.msra.mxu0 %v60
    %84 = vmatpush.msra.mxu0 %v59
    %85 = vmatmul.f32.gmra.mxu0 %v67
    %v86 = vpop.f32.mrf.mxu0
    %v87 = vadd.f32 %v63, %v86
    %88 = vdwg.mxu0
    %v89 = vmax.f32 %v87, 0.0
    %vm90 = vcmask 261120
    %91 = vst.msk [vmem:[#allocation5] sm:$0xff] %vm90, %v89
    // Predicated region
    $region26: #{client_network_forward.1} parent=1 // pred_check
      _
    $region27: #{client_network_forward.1} parent=1 // pred_check_branch
      %93 = sbr.rel (0) target = $region29
    $region28: #{client_network_forward.1} parent=1 // pred_region
      %95 = vsyncadd [#allocation4], 0
      %s97 = sshll.u32 [#allocation5], 4
      %s98 = int_to_ptr.vmem [resolvable:$true] %s97
      %s99 = sshll.u32 %s5, 4
      %s100 = int_to_ptr.hbm [resolvable:$true] %s99
      %102 = dma.vmem_to_hbm [thread:$0]  %s98, 128, %s100, [#allocation4]
    $region29: #{client_network_forward.1} parent=1 // pred_fallthru
      _
    // Predicated region
    $region30: #{client_network_forward.1} parent=1 // pred_check
      _
    $region31: #{client_network_forward.1} parent=1 // pred_check_branch
      %104 = sbr.rel (0) target = $region33
    $region32: #{client_network_forward.1} parent=1 // pred_region
      %106 = dma.done [#allocation4], 128
    $region33: #{client_network_forward.1} parent=1 // pred_fallthru
      _
    %107 = vsyncpa [#allocation3], 1
    %108 = vsyncpa [#allocation4], 1

</llo_original>
